<compile_context>
chip_gen: v5e
topology: v5e:2x2
jax: 0.10.0
libtpu: 0.0.40
codegen_flags: <defaults>
</compile_context>

<pallas_src>
import functools

import jax
import jax.numpy as jnp
from jax.experimental import pallas as pl
from jax.experimental.pallas import tpu as pltpu


def _attention_kernel(x_ref, w1_ref, b1_ref, w2_ref, b2_ref, o_ref):
    # x_ref : (C, T)   channels on sublanes, spatial positions on lanes
    # w1_ref: (Ch, C)  first 1x1 conv weight (x dtype), VMEM, constant index_map
    # b1_ref: (Ch, 1)  f32 VMEM column
    # w2_ref: (Ch, 1)  f32 VMEM column (second 1x1 conv weight, squeezed)
    # b2_ref: (1,)     f32 SMEM scalar
    # o_ref : (C, T)
    x = x_ref[...]

    # First 1x1 conv on the MXU: (Ch, C) x (C, T) -> (Ch, T), f32 accumulation.
    h = jnp.dot(w1_ref[...], x, preferred_element_type=jnp.float32)
    h = jnp.maximum(h + b1_ref[...], 0.0)                       # bias + ReLU

    # Second 1x1 conv (output width 1): weighted Ch-sublane reduce + bias.
    a = jnp.sum(h * w2_ref[...], axis=0, keepdims=True) + b2_ref[0]   # (1, T)
    a = jax.nn.sigmoid(a)                                       # EUP

    # x * attention map (broadcast over the channel/sublane axis), native dtype.
    o_ref[...] = (x * a.astype(x.dtype)).astype(o_ref.dtype)


def _pick_tile(hw, c, itemsize, n):
    """Lane-dense spatial tile: multiple of 128 dividing HW, VMEM-budgeted."""
    if hw % 128 != 0:
        return hw                                   # full-extent block is always legal
    per_buf_budget = 2 * 1024 * 1024                # bytes for one x tile (out is same;
                                                    # double-buffered total ~<= 8 MiB)
    cap = (per_buf_budget // max(1, c * itemsize)) // 128 * 128
    cap = max(128, min(cap, hw))
    if n == 1 and hw >= 256:                        # >=2 grid steps so v7x uses both TCs
        cap = min(cap, max(128, (hw // 2) // 128 * 128))
    t = cap
    while hw % t:                                   # terminates at t=128 (hw % 128 == 0)
        t -= 128
    return t


@functools.partial(jax.jit)
def attention_block(x_nchw, w1, b1, w2, b2):
    """x_nchw: (N, C, H, W); w1: (C//8, C); b1: (C//8,); w2: (1, C//8); b2: (1,)."""
    N, C, H, W = x_nchw.shape
    Ch = w1.shape[0]                   # C // 8
    HW = H * W
    t = _pick_tile(HW, C, jnp.dtype(x_nchw.dtype).itemsize, N)

    x3 = x_nchw.reshape(N, C, HW)                      # free: NCHW is contiguous
    w1v = w1.reshape(Ch, C).astype(x_nchw.dtype)       # dense 2-D, MXU operand dtype
    b1v = b1.reshape(Ch, 1).astype(jnp.float32)
    w2v = w2.reshape(Ch, 1).astype(jnp.float32)
    b2v = b2.reshape(1).astype(jnp.float32)

    out3 = pl.pallas_call(
        _attention_kernel,
        out_shape=jax.ShapeDtypeStruct((N, C, HW), x_nchw.dtype),
        grid_spec=pltpu.PrefetchScalarGridSpec(
            num_scalar_prefetch=0,
            grid=(N, pl.cdiv(HW, t)),
            in_specs=[
                pl.BlockSpec((None, C, t), lambda n, s: (n, 0, s)),   # x tile
                pl.BlockSpec((Ch, C), lambda n, s: (0, 0)),           # W1 (loaded once)
                pl.BlockSpec((Ch, 1), lambda n, s: (0, 0)),           # b1 column
                pl.BlockSpec((Ch, 1), lambda n, s: (0, 0)),           # w2 column
                pl.BlockSpec(memory_space=pltpu.MemorySpace.SMEM),    # b2 scalar
            ],
            out_specs=pl.BlockSpec((None, C, t), lambda n, s: (n, 0, s)),
        ),
        compiler_params=pltpu.CompilerParams(
            dimension_semantics=("parallel", "parallel")),
    )(x3, w1v, b1v, w2v, b2v)

    return out3.reshape(N, C, H, W)


def _reference(x_nchw, w1, b1, w2, b2):
    # Pure-JAX reference of the PyTorch forward (1x1 convs as einsums).
    h = jnp.einsum("nchw,oc->nohw", x_nchw, w1) + b1[None, :, None, None]
    h = jnp.maximum(h, 0.0)
    a = jnp.einsum("nchw,oc->nohw", h, w2) + b2[None, :, None, None]
    a = jax.nn.sigmoid(a)              # (N, 1, H, W)
    return x_nchw * a


if __name__ == "__main__":
    key = jax.random.PRNGKey(0)
    N, C, H, W = 2, 16, 16, 16         # in_features=16 -> hidden = 2; HW = 256
    Ch = C // 8

    kx, k1, kb1, k2, kb2 = jax.random.split(key, 5)
    x = jax.random.normal(kx, (N, C, H, W), dtype=jnp.float32)
    # Deterministic synthetic params (Conv2d k=1 weights with the 1x1 dims squeezed).
    w1 = jax.random.normal(k1, (Ch, C), dtype=jnp.float32) * 0.1   # (out=C//8, in=C)
    b1 = jax.random.normal(kb1, (Ch,), dtype=jnp.float32) * 0.1
    w2 = jax.random.normal(k2, (1, Ch), dtype=jnp.float32) * 0.1   # (out=1, in=C//8)
    b2 = jax.random.normal(kb2, (1,), dtype=jnp.float32) * 0.1

    out = attention_block(x, w1, b1, w2, b2)
    jax.block_until_ready(out)

    ref = _reference(x, w1, b1, w2, b2)
    assert out.shape == x.shape
    assert jnp.allclose(out, ref, atol=1e-5, rtol=1e-5), "mismatch vs reference"

    print("KERNEL_OK")
</pallas_src>

<mosaic_0001>
module attributes {stable_mosaic.version = 11 : i64} {
  func.func @_attention_kernel(%arg0: i32, %arg1: i32, %arg2: memref<1x16x256xf32, #tpu.memory_space<vmem>>, %arg3: memref<2x16xf32, #tpu.memory_space<vmem>>, %arg4: memref<2x1xf32, #tpu.memory_space<vmem>>, %arg5: memref<2x1xf32, #tpu.memory_space<vmem>>, %arg6: memref<1xf32, #tpu.memory_space<smem>>, %arg7: memref<1x16x256xf32, #tpu.memory_space<vmem>>) attributes {dimension_semantics = [#tpu.dimension_semantics<parallel>, #tpu.dimension_semantics<parallel>], iteration_bounds = array<i64: 2, 1>, scalar_prefetch = 0 : i64, scratch_operands = 0 : i64, tpu.core_type = #tpu.core_type<tc>, window_params = [{transform_indices = @transform_0, window_bounds = array<i64: 1, 16, 256>}, {pipeline_mode = #tpu.pipeline_mode<synchronous>, transform_indices = @transform_1, window_bounds = array<i64: 2, 16>}, {pipeline_mode = #tpu.pipeline_mode<synchronous>, transform_indices = @transform_2, window_bounds = array<i64: 2, 1>}, {pipeline_mode = #tpu.pipeline_mode<synchronous>, transform_indices = @transform_3, window_bounds = array<i64: 2, 1>}, {transform_indices = @transform_4, window_bounds = array<i64: 1>}, {transform_indices = @transform_5, window_bounds = array<i64: 1, 16, 256>}]} {
    %c0 = arith.constant 0 : index
    %c0_0 = arith.constant 0 : index
    %c0_1 = arith.constant 0 : index
    %0 = vector.load %arg2[%c0, %c0_0, %c0_1] : memref<1x16x256xf32, #tpu.memory_space<vmem>>, vector<1x16x256xf32>
    %1 = vector.shape_cast %0 : vector<1x16x256xf32> to vector<16x256xf32>
    %c0_2 = arith.constant 0 : index
    %c0_3 = arith.constant 0 : index
    %2 = vector.load %arg3[%c0_2, %c0_3] : memref<2x16xf32, #tpu.memory_space<vmem>>, vector<2x16xf32>
    %cst = arith.constant dense<0.000000e+00> : vector<2x256xf32>
    %3 = tpu.matmul %2, %1, %cst {dimension_numbers = #tpu.dot_dimension_numbers<[1], [0], [0], [1], [0, 0, 1, 1], [], []>} : vector<2x16xf32>, vector<16x256xf32>, vector<2x256xf32> -> vector<2x256xf32>
    %c0_4 = arith.constant 0 : index
    %c0_5 = arith.constant 0 : index
    %4 = vector.load %arg4[%c0_4, %c0_5] : memref<2x1xf32, #tpu.memory_space<vmem>>, vector<2x1xf32>
    %5 = vector.broadcast %4 : vector<2x1xf32> to vector<2x256xf32>
    %6 = arith.addf %3, %5 : vector<2x256xf32>
    %cst_6 = arith.constant 0.000000e+00 : f32
    %7 = vector.broadcast %cst_6 : f32 to vector<2x256xf32>
    %8 = arith.maximumf %6, %7 : vector<2x256xf32>
    %c0_7 = arith.constant 0 : index
    %c0_8 = arith.constant 0 : index
    %9 = vector.load %arg5[%c0_7, %c0_8] : memref<2x1xf32, #tpu.memory_space<vmem>>, vector<2x1xf32>
    %10 = vector.broadcast %9 : vector<2x1xf32> to vector<2x256xf32>
    %11 = arith.mulf %8, %10 : vector<2x256xf32>
    %cst_9 = arith.constant dense<0.000000e+00> : vector<256xf32>
    %12 = vector.multi_reduction <add>, %11, %cst_9 [0] : vector<2x256xf32> to vector<256xf32>
    %13 = vector.shape_cast %12 : vector<256xf32> to vector<1x256xf32>
    %c0_10 = arith.constant 0 : index
    %14 = memref.load %arg6[%c0_10] : memref<1xf32, #tpu.memory_space<smem>>
    %15 = vector.broadcast %14 : f32 to vector<1x256xf32>
    %16 = arith.addf %13, %15 : vector<1x256xf32>
    %17 = arith.negf %16 : vector<1x256xf32>
    %18 = math.exp %17 : vector<1x256xf32>
    %cst_11 = arith.constant 1.000000e+00 : f32
    %19 = vector.broadcast %cst_11 : f32 to vector<1x256xf32>
    %20 = arith.addf %19, %18 : vector<1x256xf32>
    %21 = arith.divf %19, %20 : vector<1x256xf32>
    %22 = vector.broadcast %21 : vector<1x256xf32> to vector<16x256xf32>
    %23 = arith.mulf %1, %22 : vector<16x256xf32>
    %c0_12 = arith.constant 0 : index
    %c0_13 = arith.constant 0 : index
    %c0_14 = arith.constant 0 : index
    %24 = vector.load %arg7[%c0_12, %c0_13, %c0_14] : memref<1x16x256xf32, #tpu.memory_space<vmem>>, vector<1x16x256xf32>
    %25 = vector.shape_cast %24 : vector<1x16x256xf32> to vector<16x256xf32>
    %26 = vector.shape_cast %23 : vector<16x256xf32> to vector<1x16x256xf32>
    tpu.vector_store %arg7[%c0_12, %c0_13, %c0_14], %26 {strides = array<i32>} : memref<1x16x256xf32, #tpu.memory_space<vmem>>, vector<1x16x256xf32>,
    return
  }
  func.func @transform_0(%arg0: i32, %arg1: i32) -> (i32, i32, i32) {
    %c0_i32 = arith.constant 0 : i32
    %c0_i32_0 = arith.constant 0 : i32
    return %arg0, %c0_i32, %arg1 : i32, i32, i32
  }
  func.func @transform_1(%arg0: i32, %arg1: i32) -> (i32, i32) {
    %c0_i32 = arith.constant 0 : i32
    %c0_i32_0 = arith.constant 0 : i32
    %c0_i32_1 = arith.constant 0 : i32
    return %c0_i32, %c0_i32_0 : i32, i32
  }
  func.func @transform_2(%arg0: i32, %arg1: i32) -> (i32, i32) {
    %c0_i32 = arith.constant 0 : i32
    %c0_i32_0 = arith.constant 0 : i32
    %c0_i32_1 = arith.constant 0 : i32
    return %c0_i32, %c0_i32_0 : i32, i32
  }
  func.func @transform_3(%arg0: i32, %arg1: i32) -> (i32, i32) {
    %c0_i32 = arith.constant 0 : i32
    %c0_i32_0 = arith.constant 0 : i32
    %c0_i32_1 = arith.constant 0 : i32
    return %c0_i32, %c0_i32_0 : i32, i32
  }
  func.func @transform_4(%arg0: i32, %arg1: i32) -> i32 {
    %c0_i32 = arith.constant 0 : i32
    %c0_i32_0 = arith.constant 0 : i32
    return %c0_i32 : i32
  }
  func.func @transform_5(%arg0: i32, %arg1: i32) -> (i32, i32, i32) {
    %c0_i32 = arith.constant 0 : i32
    %c0_i32_0 = arith.constant 0 : i32
    return %arg0, %c0_i32, %arg1 : i32, i32, i32
  }
}

</mosaic_0001>

<llo_original>
// kernel: attention_block.1
$region0: #{attention_block.1}
  #allocation0 [shape = 'u32[]', space=smem, size = 0x4, offset = 0x4, fixed_abs, tag = 'smem constant byte address 0x4 - core index']
  #allocation1 [shape = 'u32[72,128]{1,0:T(1,128)}', space=vmem, size = 0x9000, scoped, tag = 'internal scratch']
  #allocation2 [shape = 'f32[1]{0:T(128)S(6)}', space=smem, size = 0x200, scoped, tag = 'scoped memory for attention_block.1']
  %s0 = inlined_call_operand.vmem [shape: f32[2,16,256], index: 0, kind: input, shape index: {}]
  %s1 = inlined_call_operand.vmem [shape: f32[2,16], index: 1, kind: input, shape index: {}]
  %s2 = inlined_call_operand.vmem [shape: f32[2,1], index: 2, kind: input, shape index: {}]
  %s3 = inlined_call_operand.vmem [shape: f32[2,1], index: 3, kind: input, shape index: {}]
  %s4 = inlined_call_operand.<no memory space> [shape: f32[1], index: 4, kind: input, shape index: {}]
  %s5 = inlined_call_operand.vmem [shape: f32[2,16,256], index: 5, kind: output, shape index: {}]
  %s6 = sld [smem:[#allocation0]]
  $region53: #{attention_block.1} parent=0
    _
  %s8 = ssub.s32 1, %s6
  %s9 = scalar_select 0, %s8, %s6
  %10 = sst [smem:[#allocation2]] %s4
  loop: start=0, step=1, limit=4
  $region2: #{attention_block.1} parent=0 // loop_pre_header
    _
  $region3: #{attention_block.1} parent=0 // loop_header
    %s12 = sphi 0, %s16
    %p13 = scmp.ge.s32.totalorder %s12, 4
    %s19 = sphi 0, %s31
    %s20 = sphi 0, %s27
    %s21 = sphi 0, %s19
    %s22 = sphi 0, %s20
    %s23 = sphi 0, %s21
    %s24 = sphi 0, %s22
    %s36 = sphi 0, %s38
    %s39 = sphi 0, %s36
    %s40 = sphi 0, %s39
    %s56 = sphi 0, %s40
    %s60 = sphi 0, %s60
    %s62 = sphi 0, %s60
    %s63 = sphi 0, %s62
    %s77 = sphi 0, %s63
    %s81 = sphi 0, %s81
    %s83 = sphi 0, %s81
    %s84 = sphi 0, %s83
    %s98 = sphi 0, %s84
    %s102 = sphi 0, %s102
    %s104 = sphi 0, %s102
    %s105 = sphi 0, %s104
    %s119 = sphi 0, %s105
    %s123 = sphi 0, %s123
    %s125 = sphi 0, %s123
    %s126 = sphi 0, %s125
    %s140 = sphi 0, %s126
    %s148 = sphi 0, %s150
    %s151 = sphi 0, %s148
    %s152 = sphi 0, %s151
    %s168 = sphi 0, %s152
  $region4: #{attention_block.1} parent=0 // loop_header_branch
    %15 = sbr.rel (%p13) target = $region8
  $region5: #{attention_block.1} parent=0 // loop_body
    %s17 = ssub.s32 %s12, 1
    %s18 = ssub.s32 %s12, 2
    %s25 = sadd.s32 1, %s20
    %p26 = scmp.ge.s32.totalorder %s25, 1
    %s27 = scalar_select %p26, 0, %s25
    %s28 = sadd.s32 1, %s19
    %s29 = scalar_select %p26, %s28, %s19
    %p30 = scmp.ge.s32.totalorder %s29, 2
    %s31 = scalar_select %p30, 0, %s29
    %s32 = ssub.s32 %s19, %s31
    %s33 = ssub.s32 %s20, %s27
    %s34 = sor.u32 %s32, %s33
    %p35 = scmp.eq.s32.totalorder %s34, 0
    %s37 = sadd.s32 %s36, 1
    %s38 = scalar_select %p35, %s36, %s37
    %p41 = pneg %p35
    %p42 = scmp.eq.s32.totalorder %s12, 1
    %p43 = por %p41, %p42
    %p44 = scmp.ne.s32.totalorder %s36, %s39
    %p45 = scmp.eq.s32.totalorder %s12, 0
    %p46 = por %p44, %p45
    %p47 = scmp.ne.s32.totalorder %s36, %s39
    %p48 = scmp.eq.s32.totalorder %s17, 1
    %p49 = por %p47, %p48
    %p50 = scmp.ne.s32.totalorder %s39, %s40
    %p51 = scmp.eq.s32.totalorder %s17, 0
    %p52 = por %p50, %p51
    %p53 = scmp.ne.s32.totalorder %s39, %s40
    %p54 = scmp.eq.s32.totalorder %s18, 1
    %p55 = por %p53, %p54
    %p57 = scmp.ne.s32.totalorder %s40, %s56
    %p58 = scmp.eq.s32.totalorder %s18, 0
    %p59 = por %p57, %p58
    %s61 = sadd.s32 %s60, 1
    %p64 = scmp.eq.s32.totalorder %s12, 1
    %p65 = scmp.ne.s32.totalorder %s60, %s62
    %p66 = scmp.eq.s32.totalorder %s12, 0
    %p67 = por %p65, %p66
    %p68 = scmp.ne.s32.totalorder %s60, %s62
    %p69 = scmp.eq.s32.totalorder %s17, 1
    %p70 = por %p68, %p69
    %p71 = scmp.ne.s32.totalorder %s62, %s63
    %p72 = scmp.eq.s32.totalorder %s17, 0
    %p73 = por %p71, %p72
    %p74 = scmp.ne.s32.totalorder %s62, %s63
    %p75 = scmp.eq.s32.totalorder %s18, 1
    %p76 = por %p74, %p75
    %p78 = scmp.ne.s32.totalorder %s63, %s77
    %p79 = scmp.eq.s32.totalorder %s18, 0
    %p80 = por %p78, %p79
    %s82 = sadd.s32 %s81, 1
    %p85 = scmp.eq.s32.totalorder %s12, 1
    %p86 = scmp.ne.s32.totalorder %s81, %s83
    %p87 = scmp.eq.s32.totalorder %s12, 0
    %p88 = por %p86, %p87
    %p89 = scmp.ne.s32.totalorder %s81, %s83
    %p90 = scmp.eq.s32.totalorder %s17, 1
    %p91 = por %p89, %p90
    %p92 = scmp.ne.s32.totalorder %s83, %s84
    %p93 = scmp.eq.s32.totalorder %s17, 0
    %p94 = por %p92, %p93
    %p95 = scmp.ne.s32.totalorder %s83, %s84
    %p96 = scmp.eq.s32.totalorder %s18, 1
    %p97 = por %p95, %p96
    %p99 = scmp.ne.s32.totalorder %s84, %s98
    %p100 = scmp.eq.s32.totalorder %s18, 0
    %p101 = por %p99, %p100
    %s103 = sadd.s32 %s102, 1
    %p106 = scmp.eq.s32.totalorder %s12, 1
    %p107 = scmp.ne.s32.totalorder %s102, %s104
    %p108 = scmp.eq.s32.totalorder %s12, 0
    %p109 = por %p107, %p108
    %p110 = scmp.ne.s32.totalorder %s102, %s104
    %p111 = scmp.eq.s32.totalorder %s17, 1
    %p112 = por %p110, %p111
    %p113 = scmp.ne.s32.totalorder %s104, %s105
    %p114 = scmp.eq.s32.totalorder %s17, 0
    %p115 = por %p113, %p114
    %p116 = scmp.ne.s32.totalorder %s104, %s105
    %p117 = scmp.eq.s32.totalorder %s18, 1
    %p118 = por %p116, %p117
    %p120 = scmp.ne.s32.totalorder %s105, %s119
    %p121 = scmp.eq.s32.totalorder %s18, 0
    %p122 = por %p120, %p121
    %s124 = sadd.s32 %s123, 1
    %p127 = scmp.eq.s32.totalorder %s12, 1
    %p128 = scmp.ne.s32.totalorder %s123, %s125
    %p129 = scmp.eq.s32.totalorder %s12, 0
    %p130 = por %p128, %p129
    %p131 = scmp.ne.s32.totalorder %s123, %s125
    %p132 = scmp.eq.s32.totalorder %s17, 1
    %p133 = por %p131, %p132
    %p134 = scmp.ne.s32.totalorder %s125, %s126
    %p135 = scmp.eq.s32.totalorder %s17, 0
    %p136 = por %p134, %p135
    %p137 = scmp.ne.s32.totalorder %s125, %s126
    %p138 = scmp.eq.s32.totalorder %s18, 1
    %p139 = por %p137, %p138
    %p141 = scmp.ne.s32.totalorder %s126, %s140
    %p142 = scmp.eq.s32.totalorder %s18, 0
    %p143 = por %p141, %p142
    %s144 = ssub.s32 %s19, %s31
    %s145 = ssub.s32 %s20, %s27
    %s146 = sor.u32 %s144, %s145
    %p147 = scmp.eq.s32.totalorder %s146, 0
    %s149 = sadd.s32 %s148, 1
    %s150 = scalar_select %p147, %s148, %s149
    %p153 = pneg %p147
    %p154 = scmp.eq.s32.totalorder %s12, 1
    %p155 = por %p153, %p154
    %p156 = scmp.ne.s32.totalorder %s148, %s151
    %p157 = scmp.eq.s32.totalorder %s12, 0
    %p158 = por %p156, %p157
    %p159 = scmp.ne.s32.totalorder %s148, %s151
    %p160 = scmp.eq.s32.totalorder %s17, 1
    %p161 = por %p159, %p160
    %p162 = scmp.ne.s32.totalorder %s151, %s152
    %p163 = scmp.eq.s32.totalorder %s17, 0
    %p164 = por %p162, %p163
    %p165 = scmp.ne.s32.totalorder %s151, %s152
    %p166 = scmp.eq.s32.totalorder %s18, 1
    %p167 = por %p165, %p166
    %p169 = scmp.ne.s32.totalorder %s152, %s168
    %p170 = scmp.eq.s32.totalorder %s18, 0
    %p171 = por %p169, %p170
    %p172 = scmp.le.s32.totalorder 1, %s12
    %p173 = scmp.lt.s32.totalorder %s12, 3
    %p174 = pnand %p172, %p173
    %p175 = pneg %p174
    // Predicated region
    $region9: #{attention_block.1} parent=5 // pred_check
      _
    $region10: #{attention_block.1} parent=5 // pred_check_branch
      %177 = sbr.rel (%p174) target = $region12
    $region11: #{attention_block.1} parent=5 // pred_region
      %s178 = ssub.s32 %s12, 1
      // Predicated region
      $region13: #{attention_block.1} parent=11 // pred_check
        %p179 = pneg %p73
      $region14: #{attention_block.1} parent=11 // pred_check_branch
        %181 = sbr.rel (%p179) target = $region16
      $region15: #{attention_block.1} parent=11 // pred_region
        _
      $region16: #{attention_block.1} parent=11 // pred_fallthru
        _
      // Predicated region
      $region17: #{attention_block.1} parent=11 // pred_check
        %p182 = pneg %p94
      $region18: #{attention_block.1} parent=11 // pred_check_branch
        %184 = sbr.rel (%p182) target = $region20
      $region19: #{attention_block.1} parent=11 // pred_region
        _
      $region20: #{attention_block.1} parent=11 // pred_fallthru
        _
      // Predicated region
      $region21: #{attention_block.1} parent=11 // pred_check
        %p185 = pneg %p115
      $region22: #{attention_block.1} parent=11 // pred_check_branch
        %187 = sbr.rel (%p185) target = $region24
      $region23: #{attention_block.1} parent=11 // pred_region
        _
      $region24: #{attention_block.1} parent=11 // pred_fallthru
        _
      // Predicated region
      $region25: #{attention_block.1} parent=11 // pred_check
        %p188 = pneg %p136
      $region26: #{attention_block.1} parent=11 // pred_check_branch
        %190 = sbr.rel (%p188) target = $region28
      $region27: #{attention_block.1} parent=11 // pred_region
        _
      $region28: #{attention_block.1} parent=11 // pred_fallthru
        _
    $region12: #{attention_block.1} parent=5 // pred_fallthru
      _
    %p191 = scmp.lt.s32.totalorder %s12, 2
    // Predicated region
    $region29: #{attention_block.1} parent=5 // pred_check
      %p192 = pneg %p191
    $region30: #{attention_block.1} parent=5 // pred_check_branch
      %194 = sbr.rel (%p192) target = $region32
    $region31: #{attention_block.1} parent=5 // pred_region
      // Predicated region
      $region33: #{attention_block.1} parent=31 // pred_check
        %p195 = pneg %p46
      $region34: #{attention_block.1} parent=31 // pred_check_branch
        %197 = sbr.rel (%p195) target = $region36
      $region35: #{attention_block.1} parent=31 // pred_region
        %s198 = smul.u32 2, %s20
        %p199 = scmp.lt.s32.totalorder %s19, 1
        %s200 = scalar_select %p199, %s19, 1
        %p201 = scmp.lt.s32.totalorder %s198, 1
        %s202 = scalar_select %p201, %s198, 1
        %s203 = smul.addr %s200, 4
        %s204 = sadd.s32 %s202, %s203
        %s205 = smul.addr %s204, 8
        %s206 = scalar_lea.vmem %s0, %s205
        %s207 = smul.u32 2, %s20
      $region36: #{attention_block.1} parent=31 // pred_fallthru
        _
    $region32: #{attention_block.1} parent=5 // pred_fallthru
      _
    %p208 = scmp.le.s32.totalorder 1, %s12
    %p209 = scmp.lt.s32.totalorder %s12, 3
    %p210 = pnand %p208, %p209
    %p211 = pneg %p210
    // Predicated region
    $region37: #{attention_block.1} parent=5 // pred_check
      _
    $region38: #{attention_block.1} parent=5 // pred_check_branch
      %213 = sbr.rel (%p210) target = $region40
    $region39: #{attention_block.1} parent=5 // pred_region
      %s214 = ssub.s32 %s12, 1
      %s215 = smul.u32 2, %s22
      %p216 = scmp.lt.s32.totalorder %s21, 1
      %s217 = scalar_select %p216, %s21, 1
      %p218 = scmp.lt.s32.totalorder %s215, 1
      %s219 = scalar_select %p218, %s215, 1
      %s220 = smul.addr %s217, 4
      %s221 = sadd.s32 %s219, %s220
      %s222 = smul.addr %s221, 8
      %s223 = scalar_lea.vmem %s0, %s222
      %p224 = pneg %p52
      %p225 = pneg %p49
      %p226 = pneg %p73
      %p227 = pneg %p70
      %p228 = pneg %p94
      %p229 = pneg %p91
      %p230 = pneg %p115
      %p231 = pneg %p112
      %p232 = pneg %p136
      %p233 = pneg %p133
      %p234 = pneg %p164
      %p235 = pneg %p161
      %s236 = smul.u32 2, %s22
      %p237 = scmp.lt.s32.totalorder %s21, 1
      %s238 = scalar_select %p237, %s21, 1
      %p239 = scmp.lt.s32.totalorder %s236, 1
      %s240 = scalar_select %p239, %s236, 1
      %s241 = smul.addr %s238, 4
      %s242 = sadd.s32 %s240, %s241
      %s243 = smul.addr %s242, 8
      %s244 = scalar_lea.vmem %s5, %s243
      %s245 = smul.u32 2, %s22
      %p246 = scmp.lt.s32.totalorder %s21, 1
      %s247 = scalar_select %p246, %s21, 1
      %p248 = scmp.lt.s32.totalorder %s245, 1
      %s249 = scalar_select %p248, %s245, 1
      %s250 = smul.addr %s247, 4
      %s251 = sadd.s32 %s249, %s250
      %s252 = smul.addr %s251, 8
      %s253 = scalar_lea.vmem %s0, %s252
      %s254 = smul.u32 2, %s22
      %s255 = smul.u32 2, %s22
      %p256 = scmp.lt.s32.totalorder %s21, 1
      %s257 = scalar_select %p256, %s21, 1
      %p258 = scmp.lt.s32.totalorder %s255, 1
      %s259 = scalar_select %p258, %s255, 1
      %s260 = smul.addr %s257, 4
      %s261 = sadd.s32 %s259, %s260
      %s262 = smul.addr %s261, 8
      %s263 = scalar_lea.vmem %s5, %s262
      %s264 = smul.u32 2, %s22
      %v265 = vld [vmem:[%s253] sm:$0xff]
      %v266 = vld [vmem:[%s253 + $0x8] sm:$0xff]
      %v267 = vld [vmem:[%s253 + $0x10] sm:$0xff]
      %v268 = vld [vmem:[%s253 + $0x18] sm:$0xff]
      %v269 = vld [vmem:[%s1] sm:$0x3]
      %v270 = vld [vmem:[%s2] sm:$0x3]
      %272 = vset.pattern.permute.xlu0 0
      %273 = vperm.xlu0 %272, %v270
      %v274 = vpop.permute.xlu0 %273
      %vm276 = vcmask 130048
      %v278 = vsel %vm276, %v269, 0
      %280 = vmatpush.msra.mxu0 0.0
      %281 = vmatpush.msra.mxu0 0.0
      %282 = vmatpush.msra.mxu0 0.0
      %283 = vmatpush.msra.mxu0 0.0
      %284 = vmatpush.msra.mxu0 0.0
      %285 = vmatpush.msra.mxu0 0.0
      %286 = vmatpush.msra.mxu0 0.0
      %287 = vmatpush.msra.mxu0 0.0
      %288 = vmatpush.msra.mxu0 0.0
      %289 = vmatpush.msra.mxu0 0.0
      %290 = vmatpush.msra.mxu0 0.0
      %291 = vmatpush.msra.mxu0 0.0
      %292 = vmatpush.msra.mxu0 0.0
      %293 = vmatpush.msra.mxu0 0.0
      %294 = vmatpush.msra.mxu0 %v267
      %295 = vmatpush.msra.mxu0 %v265
      %296 = vmatmul.f32.gmra.mxu0 %v278
      %v297 = vpop.f32.mrf.mxu0
      %v298 = vadd.f32 %v274, %v297
      %299 = vdwg.mxu0
      %300 = vmatpush.msra.mxu0 0.0
      %301 = vmatpush.msra.mxu0 0.0
      %302 = vmatpush.msra.mxu0 0.0
      %303 = vmatpush.msra.mxu0 0.0
      %304 = vmatpush.msra.mxu0 0.0
      %305 = vmatpush.msra.mxu0 0.0
      %306 = vmatpush.msra.mxu0 0.0
      %307 = vmatpush.msra.mxu0 0.0
      %308 = vmatpush.msra.mxu0 0.0
      %309 = vmatpush.msra.mxu0 0.0
      %310 = vmatpush.msra.mxu0 0.0
      %311 = vmatpush.msra.mxu0 0.0
      %312 = vmatpush.msra.mxu0 0.0
      %313 = vmatpush.msra.mxu0 0.0
      %314 = vmatpush.msra.mxu0 %v268
      %315 = vmatpush.msra.mxu0 %v266
      %316 = vmatmul.f32.gmra.mxu0 %v278
      %v317 = vpop.f32.mrf.mxu0
      %v318 = vadd.f32 %v274, %v317
      %319 = vdwg.mxu0
      %v320 = vmax.f32 %v298, 0.0
      %v321 = vmax.f32 %v318, 0.0
      %v322 = vld [vmem:[%s3] sm:$0x3]
      %324 = vset.pattern.permute.xlu0 0
      %325 = vperm.xlu0 %324, %v322
      %v326 = vpop.permute.xlu0 %325
      %v328 = vmul.f32 %v320, %v326
      %v329 = vmul.f32 %v321, %v326
      %vm330 = vcmask 1041408
      %v331 = vsel %vm330, %v328, 0.0
      %v332 = vrot.slane %v331, 4
      %v333 = vadd.f32 %v331, %v332
      %v334 = vrot.slane %v333, 2
      %v335 = vadd.f32 %v333, %v334
      %v336 = vrot.slane %v335, 1
      %v337 = vadd.f32 %v335, %v336
      %v338 = vsel %vm330, %v329, 0.0
      %v339 = vrot.slane %v338, 4
      %v340 = vadd.f32 %v338, %v339
      %v341 = vrot.slane %v340, 2
      %v342 = vadd.f32 %v340, %v341
      %v343 = vrot.slane %v342, 1
      %v344 = vadd.f32 %v342, %v343
      %s345 = sld [smem:[#allocation2]]
      %v346 = vstv %s345
      %v347 = vadd.f32 %v337, %v346
      %v348 = vadd.f32 %v344, %v346
      %v349 = vxor.u32 %v347, 2147483648
      %v350 = vxor.u32 %v348, 2147483648
      %v351 = vmul.f32 %v349, 1.442695
      %v352 = vpow.pop %v351
      %v353 = vmul.f32 %v350, 1.442695
      %v354 = vpow.pop %v353
      %v355 = vadd.f32 %v352, 1.0
      %v356 = vadd.f32 %v354, 1.0
      %v357 = vrcp.pop %v355
      %v358 = vmul.f32 %v355, %v357
      %v359 = vsub.f32 1.0, %v358
      %v360 = vmul.f32 %v357, %v359
      %v361 = vadd.f32 %v357, %v360
      %vm362 = vweird.f32 %v355
      %vm363 = vweird.f32 %v357
      %vm364 = vmor %vm362, %vm363
      %v365 = vsel %vm364, %v357, %v361
      %v366 = vand.u32 2147483647, %v355
      %vm367 = vcmp.eq.f32.partialorder %v366, 8.507059e+37
      %v368 = vand.u32 %v355, 2147483648
      %v369 = vor.u32 1.1754944e-38, %v368
      %v370 = vsel %vm367, %v369, %v365
      %v371 = vmul.f32 1.0, %v370
      %v372 = vrcp.pop %v356
      %v373 = vmul.f32 %v356, %v372
      %v374 = vsub.f32 1.0, %v373
      %v375 = vmul.f32 %v372, %v374
      %v376 = vadd.f32 %v372, %v375
      %vm377 = vweird.f32 %v356
      %vm378 = vweird.f32 %v372
      %vm379 = vmor %vm377, %vm378
      %v380 = vsel %vm379, %v372, %v376
      %v381 = vand.u32 2147483647, %v356
      %vm382 = vcmp.eq.f32.partialorder %v381, 8.507059e+37
      %v383 = vand.u32 %v356, 2147483648
      %v384 = vor.u32 1.1754944e-38, %v383
      %v385 = vsel %vm382, %v384, %v380
      %v386 = vmul.f32 1.0, %v385
      %v387 = vmul.f32 %v265, %v371
      %v388 = vmul.f32 %v266, %v386
      %v389 = vmul.f32 %v267, %v371
      %v390 = vmul.f32 %v268, %v386
      %391 = vst [vmem:[%s263] sm:$0xff] %v387
      %392 = vst [vmem:[%s263 + $0x8] sm:$0xff] %v388
      %393 = vst [vmem:[%s263 + $0x10] sm:$0xff] %v389
      %394 = vst [vmem:[%s263 + $0x18] sm:$0xff] %v390
      %s395 = smul.u32 2, %s22
      %p396 = scmp.lt.s32.totalorder %s21, 1
      %s397 = scalar_select %p396, %s21, 1
      %p398 = scmp.lt.s32.totalorder %s395, 1
      %s399 = scalar_select %p398, %s395, 1
      %s400 = smul.addr %s397, 4
      %s401 = sadd.s32 %s399, %s400
      %s402 = smul.addr %s401, 8
      %s403 = scalar_lea.vmem %s5, %s402
      // Predicated region
      $region41: #{attention_block.1} parent=39 // pred_check
        %p404 = pneg %p161
      $region42: #{attention_block.1} parent=39 // pred_check_branch
        %406 = sbr.rel (%p404) target = $region44
      $region43: #{attention_block.1} parent=39 // pred_region
        %s407 = smul.u32 2, %s22
      $region44: #{attention_block.1} parent=39 // pred_fallthru
        _
    $region40: #{attention_block.1} parent=5 // pred_fallthru
      _
    %p408 = scmp.le.s32.totalorder 2, %s12
    // Predicated region
    $region45: #{attention_block.1} parent=5 // pred_check
      %p409 = pneg %p408
    $region46: #{attention_block.1} parent=5 // pred_check_branch
      %411 = sbr.rel (%p409) target = $region48
    $region47: #{attention_block.1} parent=5 // pred_region
      %s412 = ssub.s32 %s12, 2
      // Predicated region
      $region49: #{attention_block.1} parent=47 // pred_check
        %p413 = pneg %p167
      $region50: #{attention_block.1} parent=47 // pred_check_branch
        %415 = sbr.rel (%p413) target = $region52
      $region51: #{attention_block.1} parent=47 // pred_region
        %s416 = smul.u32 2, %s24
        %p417 = scmp.lt.s32.totalorder %s23, 1
        %s418 = scalar_select %p417, %s23, 1
        %p419 = scmp.lt.s32.totalorder %s416, 1
        %s420 = scalar_select %p419, %s416, 1
        %s421 = smul.addr %s418, 4
        %s422 = sadd.s32 %s420, %s421
        %s423 = smul.addr %s422, 8
        %s424 = scalar_lea.vmem %s5, %s423
      $region52: #{attention_block.1} parent=47 // pred_fallthru
        _
    $region48: #{attention_block.1} parent=5 // pred_fallthru
      _
  $region6: #{attention_block.1} parent=0 // loop_footer
    %s16 = sadd.s32 1, %s12
  $region7: #{attention_block.1} parent=0 // loop_footer_branch
    %11 = sbr.rel target = $region3
  $region8: #{attention_block.1} parent=0 // loop_exit
    _

</llo_original>
